<compile_context>
chip_gen: v7x
topology: tpu7x:2x2x1
jax: 0.10.0
libtpu: 0.0.40
codegen_flags: <defaults>
</compile_context>

<pallas_src>
import functools
import math

import jax
import jax.numpy as jnp
from jax.experimental import pallas as pl
from jax.experimental.pallas import tpu as pltpu

THRESHOLD = 0.18


def _round_up(n, m):
    return ((n + m - 1) // m) * m


def _choose_batch_tile(batch):
    """Pick (padded_batch, batch_tile).

    Small batches run as one grid step (everything fits VMEM). Larger batches use
    tiles that are multiples of 128 rows (fill a v5e 128x128 MXU pass, satisfy bf16
    (16,128) tiling) while keeping grid length >= 2 so dimension_semantics=
    ("parallel",) can shard tiles across the two v7x TensorCores.
    """
    pb = _round_up(batch, 16)            # bf16 min sublane tile
    if pb <= 256:
        return pb, pb                    # grid=(1,)
    tb = 256 if pb >= 512 else 128
    return _round_up(pb, tb), tb


def _resident_spec(block_shape):
    """BlockSpec for a VMEM-resident operand (constant index_map, single-buffered)."""
    try:
        return pl.BlockSpec(block_shape, lambda i: (0, 0),
                            pipeline_mode=pl.Buffered(1))
    except (AttributeError, TypeError):
        # Older Pallas without pipeline_mode: fall back to default buffering.
        return pl.BlockSpec(block_shape, lambda i: (0, 0))


def _autoencoder_kernel(x_ref, we_t_ref, be_ref, wd_t_ref, bd_ref,
                        recon_ref, latent_ref, *, logit_threshold, training):
    """One batch tile: encoder matmul -> decoder matmul -> sigmoid / logit threshold.

    x_ref:     (TB, Din_p)     bf16
    we_t_ref:  (Din_p, Dlat_p) bf16   (encoder weight, pre-transposed)
    be_ref:    (1, Dlat_p)     f32
    wd_t_ref:  (Dlat_p, Din_p) bf16   (decoder weight, pre-transposed)
    bd_ref:    (1, Din_p)      f32
    recon_ref: (TB, Din_p)     bf16 (eval) / f32 (training)
    latent_ref:(TB, Dlat_p)    f32
    """
    x = x_ref[...]

    # encoder: latent = x @ W_enc^T + b_enc   (bf16 x bf16 -> f32 accumulate on MXU)
    latent = jnp.dot(x, we_t_ref[...], preferred_element_type=jnp.float32)
    latent = latent + be_ref[...]
    latent_ref[...] = latent

    # decoder logits = latent @ W_dec^T + b_dec
    logits = jnp.dot(latent.astype(jnp.bfloat16), wd_t_ref[...],
                     preferred_element_type=jnp.float32)
    logits = logits + bd_ref[...]

    if training:
        # training mode returns sigmoid probabilities
        recon_ref[...] = jax.nn.sigmoid(logits).astype(recon_ref.dtype)
    else:
        # eval mode: sigmoid(z) > t  <=>  z > log(t/(1-t)); skip the sigmoid (no EUP work)
        recon_ref[...] = (logits > logit_threshold).astype(recon_ref.dtype)


def prepare_params(w_enc, b_enc, w_dec, b_dec):
    """One-time weight prep: transpose to (in, out), zero-pad to lane multiples, cast bf16."""
    latent_dim, input_dim = w_enc.shape
    d_in_p = _round_up(input_dim, 128)
    d_lat_p = _round_up(latent_dim, 128)

    we_t = jnp.pad(jnp.transpose(w_enc).astype(jnp.bfloat16),
                   ((0, d_in_p - input_dim), (0, d_lat_p - latent_dim)))
    wd_t = jnp.pad(jnp.transpose(w_dec).astype(jnp.bfloat16),
                   ((0, d_lat_p - latent_dim), (0, d_in_p - input_dim)))
    be = jnp.pad(b_enc.astype(jnp.float32), (0, d_lat_p - latent_dim))[None, :]
    bd = jnp.pad(b_dec.astype(jnp.float32), (0, d_in_p - input_dim))[None, :]
    return we_t, be, wd_t, bd


@functools.partial(jax.jit,
                   static_argnames=("latent_dim", "threshold", "training"))
def simple_autoencoder_forward(x, we_t, be, wd_t, bd, *, latent_dim,
                               threshold=THRESHOLD, training=False):
    """Mirrors SimpleAutoencoder.forward. Returns (reconstruction, latent) in f32."""
    batch = x.shape[0]
    x_flat = x.reshape(batch, -1)                              # x.view(batch, -1)
    input_dim = x_flat.shape[1]
    d_in_p, d_lat_p = we_t.shape
    assert input_dim <= d_in_p and latent_dim <= d_lat_p

    pb, tb = _choose_batch_tile(batch)

    # Fused cast + zero-pad of the activations in one XLA op (no zeros().at[].set()).
    x_p = jnp.pad(x_flat.astype(jnp.bfloat16),
                  ((0, pb - batch), (0, d_in_p - input_dim)))

    recon_dtype = jnp.float32 if training else jnp.bfloat16    # 0/1 is exact in bf16
    recon_bytes = 4 if training else 2
    logit_threshold = math.log(threshold / (1.0 - threshold))

    kernel = functools.partial(_autoencoder_kernel,
                               logit_threshold=logit_threshold,
                               training=training)

    weight_bytes = (we_t.size + wd_t.size) * 2 + (be.size + bd.size) * 4
    cost = pl.CostEstimate(
        flops=4 * pb * d_in_p * d_lat_p,                       # encoder + decoder matmuls
        transcendentals=(2 * pb * d_in_p) if training else 0,  # exp+recip per sigmoid
        bytes_accessed=(pb * d_in_p * 2                        # x (bf16)
                        + weight_bytes
                        + pb * d_in_p * recon_bytes            # recon store
                        + pb * d_lat_p * 4))                   # latent store

    # VMEM budget: single-buffered weights + double-buffered activation tiles, with
    # headroom; clamped to 48 MiB so large tiles stay safe on v7x's 64 MiB VMEM.
    vmem_needed = (weight_bytes
                   + 2 * tb * d_in_p * 2
                   + 2 * tb * d_in_p * recon_bytes
                   + 2 * tb * d_lat_p * 4)
    vmem_limit = int(min(max(2 * vmem_needed, 16 << 20), 48 << 20))

    recon_p, latent_p = pl.pallas_call(
        kernel,
        out_shape=(
            jax.ShapeDtypeStruct((pb, d_in_p), recon_dtype),    # reconstruction
            jax.ShapeDtypeStruct((pb, d_lat_p), jnp.float32),   # latent
        ),
        grid=(pb // tb,),
        in_specs=[
            pl.BlockSpec((tb, d_in_p), lambda i: (i, 0)),       # x batch tile
            _resident_spec((d_in_p, d_lat_p)),                  # enc weight (resident)
            _resident_spec((1, d_lat_p)),                       # enc bias
            _resident_spec((d_lat_p, d_in_p)),                  # dec weight (resident)
            _resident_spec((1, d_in_p)),                        # dec bias
        ],
        out_specs=(
            pl.BlockSpec((tb, d_in_p), lambda i: (i, 0)),
            pl.BlockSpec((tb, d_lat_p), lambda i: (i, 0)),
        ),
        compiler_params=pltpu.CompilerParams(
            dimension_semantics=("parallel",),        # v7x: shard batch tiles across TCs
            vmem_limit_bytes=vmem_limit),
        cost_estimate=cost,
    )(x_p, we_t, be, wd_t, bd)

    # Slice padded batch / lanes back; fuse the f32 cast into the slice copy.
    recon = recon_p[:batch, :input_dim].astype(jnp.float32)
    latent = latent_p[:batch, :latent_dim]
    return recon, latent


def init_params(key, input_dim, latent_dim):
    """Parameter init mimicking nn.Linear's U(-1/sqrt(fan_in), 1/sqrt(fan_in))."""
    k1, k2, k3, k4 = jax.random.split(key, 4)
    bound_e = 1.0 / jnp.sqrt(jnp.float32(input_dim))
    bound_d = 1.0 / jnp.sqrt(jnp.float32(latent_dim))
    # encoder: Linear(input_dim -> latent_dim): W (latent, input), b (latent,)
    w_enc = jax.random.uniform(k1, (latent_dim, input_dim), jnp.float32, -bound_e, bound_e)
    b_enc = jax.random.uniform(k2, (latent_dim,), jnp.float32, -bound_e, bound_e)
    # decoder: Linear(latent_dim -> input_dim): W (input, latent), b (input,)   <- bugfix
    w_dec = jax.random.uniform(k3, (input_dim, latent_dim), jnp.float32, -bound_d, bound_d)
    b_dec = jax.random.uniform(k4, (input_dim,), jnp.float32, -bound_d, bound_d)
    return w_enc, b_enc, w_dec, b_dec


if __name__ == "__main__":
    key = jax.random.PRNGKey(0)
    k_x, k_p = jax.random.split(key)

    # Small shapes consistent with the module (original: 5 neurons x 1000 steps, latent 200).
    # Intentionally NOT lane-aligned, to exercise the pad-to-128 / slice-back path.
    num_neurons, time_steps = 5, 100
    input_dim = num_neurons * time_steps        # 500 -> padded to 512 internally
    latent_dim = 120                            # -> padded to 128 internally
    batch = 32                                  # fits VMEM -> single grid step

    # Synthetic "spike" input, same layout as the PyTorch (B, num_neurons, time_steps) tensor.
    x = (jax.random.uniform(k_x, (batch, num_neurons, time_steps)) > 0.5).astype(jnp.float32)
    w_enc, b_enc, w_dec, b_dec = init_params(k_p, input_dim, latent_dim)

    # One-time weight preparation (transpose + pad + bf16), off the per-call hot path.
    we_t, be, wd_t, bd = prepare_params(w_enc, b_enc, w_dec, b_dec)

    # Eval-mode forward (threshold applied), as in `model.eval()`.
    recon, latent = simple_autoencoder_forward(
        x, we_t, be, wd_t, bd, latent_dim=latent_dim,
        threshold=THRESHOLD, training=False)
    jax.block_until_ready((recon, latent))

    # Reference in plain JAX, mirroring the kernel's bf16 operand rounding.
    x_flat = x.reshape(batch, -1)
    xb = x_flat.astype(jnp.bfloat16).astype(jnp.float32)
    web = w_enc.astype(jnp.bfloat16).astype(jnp.float32)
    wdb = w_dec.astype(jnp.bfloat16).astype(jnp.float32)
    latent_ref = xb @ web.T + b_enc
    logits_ref = latent_ref.astype(jnp.bfloat16).astype(jnp.float32) @ wdb.T + b_dec
    probs_ref = jax.nn.sigmoid(logits_ref)
    recon_ref = (probs_ref > THRESHOLD).astype(jnp.float32)

    assert recon.shape == (batch, input_dim) and latent.shape == (batch, latent_dim)
    assert recon.dtype == jnp.float32 and latent.dtype == jnp.float32
    assert jnp.allclose(latent, latent_ref, atol=2e-2, rtol=2e-2)
    # Thresholded bits: ignore probabilities within a tiny margin of the threshold,
    # where accumulation-order differences could legitimately flip the bit.
    safe = jnp.abs(probs_ref - THRESHOLD) > 5e-3
    assert bool(jnp.all(jnp.where(safe, recon == recon_ref, True)))

    print("KERNEL_OK")
</pallas_src>

<mosaic_0001>
module attributes {stable_mosaic.version = 11 : i64} {
  func.func @_autoencoder_kernel(%arg0: i32, %arg1: memref<32x512xbf16, #tpu.memory_space<vmem>>, %arg2: memref<512x128xbf16, #tpu.memory_space<vmem>>, %arg3: memref<1x128xf32, #tpu.memory_space<vmem>>, %arg4: memref<128x512xbf16, #tpu.memory_space<vmem>>, %arg5: memref<1x512xf32, #tpu.memory_space<vmem>>, %arg6: memref<32x512xbf16, #tpu.memory_space<vmem>>, %arg7: memref<32x128xf32, #tpu.memory_space<vmem>>) attributes {dimension_semantics = [#tpu.dimension_semantics<parallel>], iteration_bounds = array<i64: 1>, scalar_prefetch = 0 : i64, scratch_operands = 0 : i64, tpu.core_type = #tpu.core_type<tc>, window_params = [{transform_indices = @transform_0, window_bounds = array<i64: 32, 512>}, {pipeline_mode = #tpu.pipeline_mode<synchronous>, transform_indices = @transform_1, window_bounds = array<i64: 512, 128>}, {pipeline_mode = #tpu.pipeline_mode<synchronous>, transform_indices = @transform_2, window_bounds = array<i64: 1, 128>}, {pipeline_mode = #tpu.pipeline_mode<synchronous>, transform_indices = @transform_3, window_bounds = array<i64: 128, 512>}, {pipeline_mode = #tpu.pipeline_mode<synchronous>, transform_indices = @transform_4, window_bounds = array<i64: 1, 512>}, {transform_indices = @transform_5, window_bounds = array<i64: 32, 512>}, {transform_indices = @transform_6, window_bounds = array<i64: 32, 128>}]} {
    %c0 = arith.constant 0 : index
    %c0_0 = arith.constant 0 : index
    %0 = vector.load %arg1[%c0, %c0_0] : memref<32x512xbf16, #tpu.memory_space<vmem>>, vector<32x512xbf16>
    %c0_1 = arith.constant 0 : index
    %c0_2 = arith.constant 0 : index
    %1 = vector.load %arg2[%c0_1, %c0_2] : memref<512x128xbf16, #tpu.memory_space<vmem>>, vector<512x128xbf16>
    %cst = arith.constant dense<0.000000e+00> : vector<32x128xf32>
    %2 = tpu.matmul %0, %1, %cst {dimension_numbers = #tpu.dot_dimension_numbers<[1], [0], [0], [1], [0, 0, 1, 1], [], []>} : vector<32x512xbf16>, vector<512x128xbf16>, vector<32x128xf32> -> vector<32x128xf32>
    %c0_3 = arith.constant 0 : index
    %c0_4 = arith.constant 0 : index
    %3 = vector.load %arg3[%c0_3, %c0_4] : memref<1x128xf32, #tpu.memory_space<vmem>>, vector<1x128xf32>
    %4 = vector.broadcast %3 : vector<1x128xf32> to vector<32x128xf32>
    %5 = arith.addf %2, %4 : vector<32x128xf32>
    %c0_5 = arith.constant 0 : index
    %c0_6 = arith.constant 0 : index
    %6 = vector.load %arg7[%c0_5, %c0_6] : memref<32x128xf32, #tpu.memory_space<vmem>>, vector<32x128xf32>
    tpu.vector_store %arg7[%c0_5, %c0_6], %5 {strides = array<i32>} : memref<32x128xf32, #tpu.memory_space<vmem>>, vector<32x128xf32>,
    %7 = arith.truncf %5 : vector<32x128xf32> to vector<32x128xbf16>
    %c0_7 = arith.constant 0 : index
    %c0_8 = arith.constant 0 : index
    %8 = vector.load %arg4[%c0_7, %c0_8] : memref<128x512xbf16, #tpu.memory_space<vmem>>, vector<128x512xbf16>
    %cst_9 = arith.constant dense<0.000000e+00> : vector<32x512xf32>
    %9 = tpu.matmul %7, %8, %cst_9 {dimension_numbers = #tpu.dot_dimension_numbers<[1], [0], [0], [1], [0, 0, 1, 1], [], []>} : vector<32x128xbf16>, vector<128x512xbf16>, vector<32x512xf32> -> vector<32x512xf32>
    %c0_10 = arith.constant 0 : index
    %c0_11 = arith.constant 0 : index
    %10 = vector.load %arg5[%c0_10, %c0_11] : memref<1x512xf32, #tpu.memory_space<vmem>>, vector<1x512xf32>
    %11 = vector.broadcast %10 : vector<1x512xf32> to vector<32x512xf32>
    %12 = arith.addf %9, %11 : vector<32x512xf32>
    %cst_12 = arith.constant -1.51634753 : f32
    %13 = vector.broadcast %cst_12 : f32 to vector<32x512xf32>
    %14 = arith.cmpf ogt, %12, %13 : vector<32x512xf32>
    %15 = arith.extui %14 : vector<32x512xi1> to vector<32x512xi32>
    %16 = arith.sitofp %15 : vector<32x512xi32> to vector<32x512xf32>
    %17 = arith.truncf %16 : vector<32x512xf32> to vector<32x512xbf16>
    %c0_13 = arith.constant 0 : index
    %c0_14 = arith.constant 0 : index
    %18 = vector.load %arg6[%c0_13, %c0_14] : memref<32x512xbf16, #tpu.memory_space<vmem>>, vector<32x512xbf16>
    tpu.vector_store %arg6[%c0_13, %c0_14], %17 {strides = array<i32>} : memref<32x512xbf16, #tpu.memory_space<vmem>>, vector<32x512xbf16>,
    return
  }
  func.func @transform_0(%arg0: i32) -> (i32, i32) {
    %c0_i32 = arith.constant 0 : i32
    %c0_i32_0 = arith.constant 0 : i32
    return %arg0, %c0_i32 : i32, i32
  }
  func.func @transform_1(%arg0: i32) -> (i32, i32) {
    %c0_i32 = arith.constant 0 : i32
    %c0_i32_0 = arith.constant 0 : i32
    %c0_i32_1 = arith.constant 0 : i32
    return %c0_i32, %c0_i32_0 : i32, i32
  }
  func.func @transform_2(%arg0: i32) -> (i32, i32) {
    %c0_i32 = arith.constant 0 : i32
    %c0_i32_0 = arith.constant 0 : i32
    %c0_i32_1 = arith.constant 0 : i32
    return %c0_i32, %c0_i32_0 : i32, i32
  }
  func.func @transform_3(%arg0: i32) -> (i32, i32) {
    %c0_i32 = arith.constant 0 : i32
    %c0_i32_0 = arith.constant 0 : i32
    %c0_i32_1 = arith.constant 0 : i32
    return %c0_i32, %c0_i32_0 : i32, i32
  }
  func.func @transform_4(%arg0: i32) -> (i32, i32) {
    %c0_i32 = arith.constant 0 : i32
    %c0_i32_0 = arith.constant 0 : i32
    %c0_i32_1 = arith.constant 0 : i32
    return %c0_i32, %c0_i32_0 : i32, i32
  }
  func.func @transform_5(%arg0: i32) -> (i32, i32) {
    %c0_i32 = arith.constant 0 : i32
    %c0_i32_0 = arith.constant 0 : i32
    return %arg0, %c0_i32 : i32, i32
  }
  func.func @transform_6(%arg0: i32) -> (i32, i32) {
    %c0_i32 = arith.constant 0 : i32
    %c0_i32_0 = arith.constant 0 : i32
    return %arg0, %c0_i32 : i32, i32
  }
}

</mosaic_0001>

<llo_original>
// kernel: simple_autoencoder_forward.1
$region0: #{simple_autoencoder_forward.1}
  #allocation0 [shape = 'u32[]', space=smem, size = 0x4, offset = 0x4, fixed_abs, tag = 'smem constant byte address 0x4 - core index']
  #allocation1 [shape = 'u32[144,128]{1,0:T(1,128)}', space=vmem, size = 0x12000, scoped, tag = 'internal scratch']
  %s0 = inlined_call_operand.vmem [shape: bf16[32,512], index: 0, kind: input, shape index: {}]
  %s1 = inlined_call_operand.vmem [shape: bf16[512,128], index: 1, kind: input, shape index: {}]
  %s2 = inlined_call_operand.vmem [shape: f32[1,128], index: 2, kind: input, shape index: {}]
  %s3 = inlined_call_operand.vmem [shape: bf16[128,512], index: 3, kind: input, shape index: {}]
  %s4 = inlined_call_operand.vmem [shape: f32[1,512], index: 4, kind: input, shape index: {}]
  %s5 = inlined_call_operand.vmem [shape: bf16[32,512], index: 5, kind: output, shape index: {0}]
  %s6 = inlined_call_operand.hbm [shape: f32[32,128], index: 6, kind: output, shape index: {1}]
  %7 = xla_tuple %s5, %s6
  %s8 = sld [smem:[#allocation0]]
  $region38: #{simple_autoencoder_forward.1} parent=0
    _
  %s10 = ssub.s32 1, %s8
  %s11 = scalar_select 0, %s10, %s8
  $region1: #{simple_autoencoder_forward.1} parent=0
    #allocation2 [shape = 'u8[16384]{0}', space=vmem, size = 0x4000, scoped, tag = 'output window, operand 1, single buffered']
    #allocation3 [shape = 's32[1]{0}', space=sflag, size = 0x4, scoped, tag = 'scoped memory for simple_autoencoder_forward.1']
    %12 = vsyncpa [#allocation3], 0
    // Predicated region
    $region2: #{simple_autoencoder_forward.1} parent=1 // pred_check
      _
    $region3: #{simple_autoencoder_forward.1} parent=1 // pred_check_branch
      %14 = sbr.rel (0) target = $region5
    $region4: #{simple_autoencoder_forward.1} parent=1 // pred_region
      _
    $region5: #{simple_autoencoder_forward.1} parent=1 // pred_fallthru
      _
    // Predicated region
    $region6: #{simple_autoencoder_forward.1} parent=1 // pred_check
      _
    $region7: #{simple_autoencoder_forward.1} parent=1 // pred_check_branch
      %16 = sbr.rel (0) target = $region9
    $region8: #{simple_autoencoder_forward.1} parent=1 // pred_region
      _
    $region9: #{simple_autoencoder_forward.1} parent=1 // pred_fallthru
      _
    // Predicated region
    $region10: #{simple_autoencoder_forward.1} parent=1 // pred_check
      _
    $region11: #{simple_autoencoder_forward.1} parent=1 // pred_check_branch
      %18 = sbr.rel (0) target = $region13
    $region12: #{simple_autoencoder_forward.1} parent=1 // pred_region
      _
    $region13: #{simple_autoencoder_forward.1} parent=1 // pred_fallthru
      _
    // Predicated region
    $region14: #{simple_autoencoder_forward.1} parent=1 // pred_check
      _
    $region15: #{simple_autoencoder_forward.1} parent=1 // pred_check_branch
      %20 = sbr.rel (0) target = $region17
    $region16: #{simple_autoencoder_forward.1} parent=1 // pred_region
      _
    $region17: #{simple_autoencoder_forward.1} parent=1 // pred_fallthru
      _
    // Predicated region
    $region18: #{simple_autoencoder_forward.1} parent=1 // pred_check
      _
    $region19: #{simple_autoencoder_forward.1} parent=1 // pred_check_branch
      %22 = sbr.rel (0) target = $region21
    $region20: #{simple_autoencoder_forward.1} parent=1 // pred_region
      _
    $region21: #{simple_autoencoder_forward.1} parent=1 // pred_fallthru
      _
    %v24 = vld [vmem:[%s0] sm:$0xff]
    %v25 = vld [vmem:[%s0 + $0x8] sm:$0xff]
    %v26 = vld [vmem:[%s0 + $0x10] sm:$0xff]
    %v27 = vld [vmem:[%s0 + $0x18] sm:$0xff]
    %v28 = vld [vmem:[%s0 + $0x20] sm:$0xff]
    %v29 = vld [vmem:[%s0 + $0x28] sm:$0xff]
    %v30 = vld [vmem:[%s0 + $0x30] sm:$0xff]
    %v31 = vld [vmem:[%s0 + $0x38] sm:$0xff]
    %v32 = vld [vmem:[%s1] sm:$0xf]
    %v33 = vld [vmem:[%s1 + $0x4] sm:$0xf]
    %v34 = vld [vmem:[%s1 + $0x8] sm:$0xf]
    %v35 = vld [vmem:[%s1 + $0xc] sm:$0xf]
    %v36 = vld [vmem:[%s1 + $0x10] sm:$0xf]
    %v37 = vld [vmem:[%s1 + $0x14] sm:$0xf]
    %v38 = vld [vmem:[%s1 + $0x18] sm:$0xf]
    %v39 = vld [vmem:[%s1 + $0x1c] sm:$0xf]
    %v40 = vld [vmem:[%s1 + $0x20] sm:$0xf]
    %v41 = vld [vmem:[%s1 + $0x24] sm:$0xf]
    %v42 = vld [vmem:[%s1 + $0x28] sm:$0xf]
    %v43 = vld [vmem:[%s1 + $0x2c] sm:$0xf]
    %v44 = vld [vmem:[%s1 + $0x30] sm:$0xf]
    %v45 = vld [vmem:[%s1 + $0x34] sm:$0xf]
    %v46 = vld [vmem:[%s1 + $0x38] sm:$0xf]
    %v47 = vld [vmem:[%s1 + $0x3c] sm:$0xf]
    %v48 = vld [vmem:[%s1 + $0x40] sm:$0xf]
    %v49 = vld [vmem:[%s1 + $0x44] sm:$0xf]
    %v50 = vld [vmem:[%s1 + $0x48] sm:$0xf]
    %v51 = vld [vmem:[%s1 + $0x4c] sm:$0xf]
    %v52 = vld [vmem:[%s1 + $0x50] sm:$0xf]
    %v53 = vld [vmem:[%s1 + $0x54] sm:$0xf]
    %v54 = vld [vmem:[%s1 + $0x58] sm:$0xf]
    %v55 = vld [vmem:[%s1 + $0x5c] sm:$0xf]
    %v56 = vld [vmem:[%s1 + $0x60] sm:$0xf]
    %v57 = vld [vmem:[%s1 + $0x64] sm:$0xf]
    %v58 = vld [vmem:[%s1 + $0x68] sm:$0xf]
    %v59 = vld [vmem:[%s1 + $0x6c] sm:$0xf]
    %v60 = vld [vmem:[%s1 + $0x70] sm:$0xf]
    %v61 = vld [vmem:[%s1 + $0x74] sm:$0xf]
    %v62 = vld [vmem:[%s1 + $0x78] sm:$0xf]
    %v63 = vld [vmem:[%s1 + $0x7c] sm:$0xf]
    %v64 = vld [vmem:[%s1 + $0x80] sm:$0xf]
    %v65 = vld [vmem:[%s1 + $0x84] sm:$0xf]
    %v66 = vld [vmem:[%s1 + $0x88] sm:$0xf]
    %v67 = vld [vmem:[%s1 + $0x8c] sm:$0xf]
    %v68 = vld [vmem:[%s1 + $0x90] sm:$0xf]
    %v69 = vld [vmem:[%s1 + $0x94] sm:$0xf]
    %v70 = vld [vmem:[%s1 + $0x98] sm:$0xf]
    %v71 = vld [vmem:[%s1 + $0x9c] sm:$0xf]
    %v72 = vld [vmem:[%s1 + $0xa0] sm:$0xf]
    %v73 = vld [vmem:[%s1 + $0xa4] sm:$0xf]
    %v74 = vld [vmem:[%s1 + $0xa8] sm:$0xf]
    %v75 = vld [vmem:[%s1 + $0xac] sm:$0xf]
    %v76 = vld [vmem:[%s1 + $0xb0] sm:$0xf]
    %v77 = vld [vmem:[%s1 + $0xb4] sm:$0xf]
    %v78 = vld [vmem:[%s1 + $0xb8] sm:$0xf]
    %v79 = vld [vmem:[%s1 + $0xbc] sm:$0xf]
    %v80 = vld [vmem:[%s1 + $0xc0] sm:$0xf]
    %v81 = vld [vmem:[%s1 + $0xc4] sm:$0xf]
    %v82 = vld [vmem:[%s1 + $0xc8] sm:$0xf]
    %v83 = vld [vmem:[%s1 + $0xcc] sm:$0xf]
    %v84 = vld [vmem:[%s1 + $0xd0] sm:$0xf]
    %v85 = vld [vmem:[%s1 + $0xd4] sm:$0xf]
    %v86 = vld [vmem:[%s1 + $0xd8] sm:$0xf]
    %v87 = vld [vmem:[%s1 + $0xdc] sm:$0xf]
    %v88 = vld [vmem:[%s1 + $0xe0] sm:$0xf]
    %v89 = vld [vmem:[%s1 + $0xe4] sm:$0xf]
    %v90 = vld [vmem:[%s1 + $0xe8] sm:$0xf]
    %v91 = vld [vmem:[%s1 + $0xec] sm:$0xf]
    %v92 = vld [vmem:[%s1 + $0xf0] sm:$0xf]
    %v93 = vld [vmem:[%s1 + $0xf4] sm:$0xf]
    %v94 = vld [vmem:[%s1 + $0xf8] sm:$0xf]
    %v95 = vld [vmem:[%s1 + $0xfc] sm:$0xf]
    %v96 = vld [vmem:[%s2] sm:$0x1]
    %v98 = vlaneseq
    %v99 = vshrl.u32 %v98, 7
    %v100 = vsub.s32 0, %v99
    %v101 = vrot.slane %v96, %v100
    %v111 = vunpack.c.l.b16 %v24
    %v112 = vunpack.c.h.b16 %v24
    %v113 = vunpack.c.l.b16 %v25
    %v114 = vunpack.c.h.b16 %v25
    %v115 = vunpack.c.l.b16 %v26
    %v116 = vunpack.c.h.b16 %v26
    %v117 = vunpack.c.l.b16 %v27
    %v118 = vunpack.c.h.b16 %v27
    %v119 = vunpack.c.l.b16 %v28
    %v120 = vunpack.c.h.b16 %v28
    %v121 = vunpack.c.l.b16 %v29
    %v122 = vunpack.c.h.b16 %v29
    %v123 = vunpack.c.l.b16 %v30
    %v124 = vunpack.c.h.b16 %v30
    %v125 = vunpack.c.l.b16 %v31
    %v126 = vunpack.c.h.b16 %v31
    %v127 = vpack.c.b16 %v115, %v111
    %v128 = vpack.c.b16 %v116, %v112
    %v129 = vpack.c.b16 %v117, %v113
    %v130 = vpack.c.b16 %v118, %v114
    %v131 = vpack.c.b16 %v123, %v119
    %v132 = vpack.c.b16 %v124, %v120
    %v133 = vpack.c.b16 %v125, %v121
    %v134 = vpack.c.b16 %v126, %v122
    %v207 = vunpack.c.l.b16 %v32
    %v208 = vunpack.c.l.b16 %v33
    %v209 = vunpack.c.l.b16 %v34
    %v210 = vunpack.c.l.b16 %v35
    %v211 = vunpack.c.l.b16 %v36
    %v212 = vunpack.c.l.b16 %v37
    %v213 = vunpack.c.l.b16 %v38
    %v214 = vunpack.c.l.b16 %v39
    %v215 = vunpack.c.l.b16 %v40
    %v216 = vunpack.c.l.b16 %v41
    %v217 = vunpack.c.l.b16 %v42
    %v218 = vunpack.c.l.b16 %v43
    %v219 = vunpack.c.l.b16 %v44
    %v220 = vunpack.c.l.b16 %v45
    %v221 = vunpack.c.l.b16 %v46
    %v222 = vunpack.c.l.b16 %v47
    %v223 = vunpack.c.l.b16 %v48
    %v224 = vunpack.c.l.b16 %v49
    %v225 = vunpack.c.l.b16 %v50
    %v226 = vunpack.c.l.b16 %v51
    %v227 = vunpack.c.l.b16 %v52
    %v228 = vunpack.c.l.b16 %v53
    %v229 = vunpack.c.l.b16 %v54
    %v230 = vunpack.c.l.b16 %v55
    %v231 = vunpack.c.l.b16 %v56
    %v232 = vunpack.c.l.b16 %v57
    %v233 = vunpack.c.l.b16 %v58
    %v234 = vunpack.c.l.b16 %v59
    %v235 = vunpack.c.l.b16 %v60
    %v236 = vunpack.c.l.b16 %v61
    %v237 = vunpack.c.l.b16 %v62
    %v238 = vunpack.c.l.b16 %v63
    %v239 = vunpack.c.l.b16 %v64
    %v240 = vunpack.c.l.b16 %v65
    %v241 = vunpack.c.l.b16 %v66
    %v242 = vunpack.c.l.b16 %v67
    %v243 = vunpack.c.l.b16 %v68
    %v244 = vunpack.c.l.b16 %v69
    %v245 = vunpack.c.l.b16 %v70
    %v246 = vunpack.c.l.b16 %v71
    %v247 = vunpack.c.l.b16 %v72
    %v248 = vunpack.c.l.b16 %v73
    %v249 = vunpack.c.l.b16 %v74
    %v250 = vunpack.c.l.b16 %v75
    %v251 = vunpack.c.l.b16 %v76
    %v252 = vunpack.c.l.b16 %v77
    %v253 = vunpack.c.l.b16 %v78
    %v254 = vunpack.c.l.b16 %v79
    %v255 = vunpack.c.l.b16 %v80
    %v256 = vunpack.c.l.b16 %v81
    %v257 = vunpack.c.l.b16 %v82
    %v258 = vunpack.c.l.b16 %v83
    %v259 = vunpack.c.l.b16 %v84
    %v260 = vunpack.c.l.b16 %v85
    %v261 = vunpack.c.l.b16 %v86
    %v262 = vunpack.c.l.b16 %v87
    %v263 = vunpack.c.l.b16 %v88
    %v264 = vunpack.c.l.b16 %v89
    %v265 = vunpack.c.l.b16 %v90
    %v266 = vunpack.c.l.b16 %v91
    %v267 = vunpack.c.l.b16 %v92
    %v268 = vunpack.c.l.b16 %v93
    %v269 = vunpack.c.l.b16 %v94
    %v270 = vunpack.c.l.b16 %v95
    %v271 = vpack.c.b16 %v208, %v207
    %v272 = vpack.c.b16 %v210, %v209
    %v273 = vpack.c.b16 %v212, %v211
    %v274 = vpack.c.b16 %v214, %v213
    %v275 = vpack.c.b16 %v216, %v215
    %v276 = vpack.c.b16 %v218, %v217
    %v277 = vpack.c.b16 %v220, %v219
    %v278 = vpack.c.b16 %v222, %v221
    %v279 = vpack.c.b16 %v224, %v223
    %v280 = vpack.c.b16 %v226, %v225
    %v281 = vpack.c.b16 %v228, %v227
    %v282 = vpack.c.b16 %v230, %v229
    %v283 = vpack.c.b16 %v232, %v231
    %v284 = vpack.c.b16 %v234, %v233
    %v285 = vpack.c.b16 %v236, %v235
    %v286 = vpack.c.b16 %v238, %v237
    %v287 = vpack.c.b16 %v240, %v239
    %v288 = vpack.c.b16 %v242, %v241
    %v289 = vpack.c.b16 %v244, %v243
    %v290 = vpack.c.b16 %v246, %v245
    %v291 = vpack.c.b16 %v248, %v247
    %v292 = vpack.c.b16 %v250, %v249
    %v293 = vpack.c.b16 %v252, %v251
    %v294 = vpack.c.b16 %v254, %v253
    %v295 = vpack.c.b16 %v256, %v255
    %v296 = vpack.c.b16 %v258, %v257
    %v297 = vpack.c.b16 %v260, %v259
    %v298 = vpack.c.b16 %v262, %v261
    %v299 = vpack.c.b16 %v264, %v263
    %v300 = vpack.c.b16 %v266, %v265
    %v301 = vpack.c.b16 %v268, %v267
    %v302 = vpack.c.b16 %v270, %v269
    %335 = vmatprep.subr.bf16.mxu0 0
    %336 = vmatpush1.bf16.msra.mxu0 %v271
    %337 = vmatprep.subr.bf16.mxu0 0
    %338 = vmatpush1.bf16.msra.mxu0 %v272
    %339 = vmatprep.subr.bf16.mxu0 0
    %340 = vmatpush1.bf16.msra.mxu0 %v273
    %341 = vmatprep.subr.bf16.mxu0 0
    %342 = vmatpush1.bf16.msra.mxu0 %v274
    %343 = vmatprep.subr.bf16.mxu0 0
    %344 = vmatpush1.bf16.msra.mxu0 %v275
    %345 = vmatprep.subr.bf16.mxu0 0
    %346 = vmatpush1.bf16.msra.mxu0 %v276
    %347 = vmatprep.subr.bf16.mxu0 0
    %348 = vmatpush1.bf16.msra.mxu0 %v277
    %349 = vmatprep.subr.bf16.mxu0 0
    %350 = vmatpush1.bf16.msra.mxu0 %v278
    %351 = vmatprep.subr.bf16.mxu0 0
    %352 = vmatpush1.bf16.msra.mxu0 %v279
    %353 = vmatprep.subr.bf16.mxu0 0
    %354 = vmatpush1.bf16.msra.mxu0 %v280
    %355 = vmatprep.subr.bf16.mxu0 0
    %356 = vmatpush1.bf16.msra.mxu0 %v281
    %357 = vmatprep.subr.bf16.mxu0 0
    %358 = vmatpush1.bf16.msra.mxu0 %v282
    %359 = vmatprep.subr.bf16.mxu0 0
    %360 = vmatpush1.bf16.msra.mxu0 %v283
    %361 = vmatprep.subr.bf16.mxu0 0
    %362 = vmatpush1.bf16.msra.mxu0 %v284
    %363 = vmatprep.subr.bf16.mxu0 0
    %364 = vmatpush1.bf16.msra.mxu0 %v285
    %365 = vmatprep.subr.bf16.mxu0 0
    %366 = vmatpush1.bf16.msra.mxu0 %v286
    %367 = vmatprep.mubr.bf16.mxu0 %v128
    %368 = vmatmul.mubr.bf16.gmra.mrb[0].mxu0 %v127
    %v369 = vpop.f32.mrb[0].mxu0
    %v370 = vadd.f32 %v101, %v369
    %v371 = vpop.f32.mrb[0].mxu0
    %v372 = vpop.f32.mrb[0].mxu0
    %v373 = vadd.f32 %v101, %v372
    %v374 = vpop.f32.mrb[0].mxu0
    %375 = vmatprep.mubr.bf16.mxu0 %v132
    %376 = vmatmul.mubr.bf16.gmra.mrb[0].mxu0 %v131
    %v377 = vpop.f32.mrb[0].mxu0
    %v378 = vadd.f32 %v101, %v377
    %v379 = vpop.f32.mrb[0].mxu0
    %v380 = vpop.f32.mrb[0].mxu0
    %v381 = vadd.f32 %v101, %v380
    %v382 = vpop.f32.mrb[0].mxu0
    %383 = vdwg.mxu0
    %384 = vmatprep.subr.bf16.mxu0 0
    %385 = vmatpush1.bf16.msra.mxu0 %v287
    %386 = vmatprep.subr.bf16.mxu0 0
    %387 = vmatpush1.bf16.msra.mxu0 %v288
    %388 = vmatprep.subr.bf16.mxu0 0
    %389 = vmatpush1.bf16.msra.mxu0 %v289
    %390 = vmatprep.subr.bf16.mxu0 0
    %391 = vmatpush1.bf16.msra.mxu0 %v290
    %392 = vmatprep.subr.bf16.mxu0 0
    %393 = vmatpush1.bf16.msra.mxu0 %v291
    %394 = vmatprep.subr.bf16.mxu0 0
    %395 = vmatpush1.bf16.msra.mxu0 %v292
    %396 = vmatprep.subr.bf16.mxu0 0
    %397 = vmatpush1.bf16.msra.mxu0 %v293
    %398 = vmatprep.subr.bf16.mxu0 0
    %399 = vmatpush1.bf16.msra.mxu0 %v294
    %400 = vmatprep.subr.bf16.mxu0 0
    %401 = vmatpush1.bf16.msra.mxu0 %v295
    %402 = vmatprep.subr.bf16.mxu0 0
    %403 = vmatpush1.bf16.msra.mxu0 %v296
    %404 = vmatprep.subr.bf16.mxu0 0
    %405 = vmatpush1.bf16.msra.mxu0 %v297
    %406 = vmatprep.subr.bf16.mxu0 0
    %407 = vmatpush1.bf16.msra.mxu0 %v298
    %408 = vmatprep.subr.bf16.mxu0 0
    %409 = vmatpush1.bf16.msra.mxu0 %v299
    %410 = vmatprep.subr.bf16.mxu0 0
    %411 = vmatpush1.bf16.msra.mxu0 %v300
    %412 = vmatprep.subr.bf16.mxu0 0
    %413 = vmatpush1.bf16.msra.mxu0 %v301
    %414 = vmatprep.subr.bf16.mxu0 0
    %415 = vmatpush1.bf16.msra.mxu0 %v302
    %416 = vmatprep.mubr.bf16.mxu0 %v130
    %417 = vmatmul.mubr.bf16.gmra.mrb[0].mxu0 %v129
    %v418 = vpop.f32.mrb[0].mxu0
    %v419 = vadd.f32 %v370, %v418
    %v420 = vpop.f32.mrb[0].mxu0
    %v421 = vpop.f32.mrb[0].mxu0
    %v422 = vadd.f32 %v373, %v421
    %v423 = vpop.f32.mrb[0].mxu0
    %424 = vmatprep.mubr.bf16.mxu0 %v134
    %425 = vmatmul.mubr.bf16.gmra.mrb[0].mxu0 %v133
    %v426 = vpop.f32.mrb[0].mxu0
    %v427 = vadd.f32 %v378, %v426
    %v428 = vpop.f32.mrb[0].mxu0
    %v429 = vpop.f32.mrb[0].mxu0
    %v430 = vadd.f32 %v381, %v429
    %v431 = vpop.f32.mrb[0].mxu0
    %432 = vdwg.mxu0
    %433 = vst [vmem:[#allocation2] sm:$0xff] %v419
    %434 = vst [vmem:[#allocation2 + $0x8] sm:$0xff] %v422
    %435 = vst [vmem:[#allocation2 + $0x10] sm:$0xff] %v427
    %436 = vst [vmem:[#allocation2 + $0x18] sm:$0xff] %v430
    %v437 = vpack.c.bf16 %v422, %v419
    %v438 = vpack.c.bf16 %v430, %v427
    %v439 = vld [vmem:[%s3] sm:$0xff]
    %v440 = vld [vmem:[%s3 + $0x8] sm:$0xff]
    %v441 = vld [vmem:[%s3 + $0x10] sm:$0xff]
    %v442 = vld [vmem:[%s3 + $0x18] sm:$0xff]
    %v443 = vld [vmem:[%s3 + $0x20] sm:$0xff]
    %v444 = vld [vmem:[%s3 + $0x28] sm:$0xff]
    %v445 = vld [vmem:[%s3 + $0x30] sm:$0xff]
    %v446 = vld [vmem:[%s3 + $0x38] sm:$0xff]
    %v447 = vld [vmem:[%s3 + $0x40] sm:$0xff]
    %v448 = vld [vmem:[%s3 + $0x48] sm:$0xff]
    %v449 = vld [vmem:[%s3 + $0x50] sm:$0xff]
    %v450 = vld [vmem:[%s3 + $0x58] sm:$0xff]
    %v451 = vld [vmem:[%s3 + $0x60] sm:$0xff]
    %v452 = vld [vmem:[%s3 + $0x68] sm:$0xff]
    %v453 = vld [vmem:[%s3 + $0x70] sm:$0xff]
    %v454 = vld [vmem:[%s3 + $0x78] sm:$0xff]
    %v455 = vld [vmem:[%s3 + $0x80] sm:$0xff]
    %v456 = vld [vmem:[%s3 + $0x88] sm:$0xff]
    %v457 = vld [vmem:[%s3 + $0x90] sm:$0xff]
    %v458 = vld [vmem:[%s3 + $0x98] sm:$0xff]
    %v459 = vld [vmem:[%s3 + $0xa0] sm:$0xff]
    %v460 = vld [vmem:[%s3 + $0xa8] sm:$0xff]
    %v461 = vld [vmem:[%s3 + $0xb0] sm:$0xff]
    %v462 = vld [vmem:[%s3 + $0xb8] sm:$0xff]
    %v463 = vld [vmem:[%s3 + $0xc0] sm:$0xff]
    %v464 = vld [vmem:[%s3 + $0xc8] sm:$0xff]
    %v465 = vld [vmem:[%s3 + $0xd0] sm:$0xff]
    %v466 = vld [vmem:[%s3 + $0xd8] sm:$0xff]
    %v467 = vld [vmem:[%s3 + $0xe0] sm:$0xff]
    %v468 = vld [vmem:[%s3 + $0xe8] sm:$0xff]
    %v469 = vld [vmem:[%s3 + $0xf0] sm:$0xff]
    %v470 = vld [vmem:[%s3 + $0xf8] sm:$0xff]
    %v471 = vld [vmem:[%s4] sm:$0xf]
    %v473 = vlaneseq
    %v474 = vshrl.u32 %v473, 7
    %v475 = vsub.s32 0, %v474
    %v476 = vrot.slane %v471, %v475
    %v477 = vlaneseq
    %v478 = vshrl.u32 %v477, 7
    %v479 = vsub.s32 1, %v478
    %v480 = vrot.slane %v471, %v479
    %v481 = vlaneseq
    %v482 = vshrl.u32 %v481, 7
    %v483 = vsub.s32 2, %v482
    %v484 = vrot.slane %v471, %v483
    %v485 = vlaneseq
    %v486 = vshrl.u32 %v485, 7
    %v487 = vsub.s32 3, %v486
    %v488 = vrot.slane %v471, %v487
    %v525 = vunpack.c.l.b16 %v439
    %v526 = vunpack.c.h.b16 %v439
    %v527 = vunpack.c.l.b16 %v440
    %v528 = vunpack.c.h.b16 %v440
    %v529 = vunpack.c.l.b16 %v441
    %v530 = vunpack.c.h.b16 %v441
    %v531 = vunpack.c.l.b16 %v442
    %v532 = vunpack.c.h.b16 %v442
    %v533 = vunpack.c.l.b16 %v443
    %v534 = vunpack.c.h.b16 %v443
    %v535 = vunpack.c.l.b16 %v444
    %v536 = vunpack.c.h.b16 %v444
    %v537 = vunpack.c.l.b16 %v445
    %v538 = vunpack.c.h.b16 %v445
    %v539 = vunpack.c.l.b16 %v446
    %v540 = vunpack.c.h.b16 %v446
    %v541 = vunpack.c.l.b16 %v447
    %v542 = vunpack.c.h.b16 %v447
    %v543 = vunpack.c.l.b16 %v448
    %v544 = vunpack.c.h.b16 %v448
    %v545 = vunpack.c.l.b16 %v449
    %v546 = vunpack.c.h.b16 %v449
    %v547 = vunpack.c.l.b16 %v450
    %v548 = vunpack.c.h.b16 %v450
    %v549 = vunpack.c.l.b16 %v451
    %v550 = vunpack.c.h.b16 %v451
    %v551 = vunpack.c.l.b16 %v452
    %v552 = vunpack.c.h.b16 %v452
    %v553 = vunpack.c.l.b16 %v453
    %v554 = vunpack.c.h.b16 %v453
    %v555 = vunpack.c.l.b16 %v454
    %v556 = vunpack.c.h.b16 %v454
    %v557 = vunpack.c.l.b16 %v455
    %v558 = vunpack.c.h.b16 %v455
    %v559 = vunpack.c.l.b16 %v456
    %v560 = vunpack.c.h.b16 %v456
    %v561 = vunpack.c.l.b16 %v457
    %v562 = vunpack.c.h.b16 %v457
    %v563 = vunpack.c.l.b16 %v458
    %v564 = vunpack.c.h.b16 %v458
    %v565 = vunpack.c.l.b16 %v459
    %v566 = vunpack.c.h.b16 %v459
    %v567 = vunpack.c.l.b16 %v460
    %v568 = vunpack.c.h.b16 %v460
    %v569 = vunpack.c.l.b16 %v461
    %v570 = vunpack.c.h.b16 %v461
    %v571 = vunpack.c.l.b16 %v462
    %v572 = vunpack.c.h.b16 %v462
    %v573 = vunpack.c.l.b16 %v463
    %v574 = vunpack.c.h.b16 %v463
    %v575 = vunpack.c.l.b16 %v464
    %v576 = vunpack.c.h.b16 %v464
    %v577 = vunpack.c.l.b16 %v465
    %v578 = vunpack.c.h.b16 %v465
    %v579 = vunpack.c.l.b16 %v466
    %v580 = vunpack.c.h.b16 %v466
    %v581 = vunpack.c.l.b16 %v467
    %v582 = vunpack.c.h.b16 %v467
    %v583 = vunpack.c.l.b16 %v468
    %v584 = vunpack.c.h.b16 %v468
    %v585 = vunpack.c.l.b16 %v469
    %v586 = vunpack.c.h.b16 %v469
    %v587 = vunpack.c.l.b16 %v470
    %v588 = vunpack.c.h.b16 %v470
    %v589 = vpack.c.b16 %v529, %v525
    %v590 = vpack.c.b16 %v530, %v526
    %v591 = vpack.c.b16 %v531, %v527
    %v592 = vpack.c.b16 %v532, %v528
    %v593 = vpack.c.b16 %v537, %v533
    %v594 = vpack.c.b16 %v538, %v534
    %v595 = vpack.c.b16 %v539, %v535
    %v596 = vpack.c.b16 %v540, %v536
    %v597 = vpack.c.b16 %v545, %v541
    %v598 = vpack.c.b16 %v546, %v542
    %v599 = vpack.c.b16 %v547, %v543
    %v600 = vpack.c.b16 %v548, %v544
    %v601 = vpack.c.b16 %v553, %v549
    %v602 = vpack.c.b16 %v554, %v550
    %v603 = vpack.c.b16 %v555, %v551
    %v604 = vpack.c.b16 %v556, %v552
    %v605 = vpack.c.b16 %v561, %v557
    %v606 = vpack.c.b16 %v562, %v558
    %v607 = vpack.c.b16 %v563, %v559
    %v608 = vpack.c.b16 %v564, %v560
    %v609 = vpack.c.b16 %v569, %v565
    %v610 = vpack.c.b16 %v570, %v566
    %v611 = vpack.c.b16 %v571, %v567
    %v612 = vpack.c.b16 %v572, %v568
    %v613 = vpack.c.b16 %v577, %v573
    %v614 = vpack.c.b16 %v578, %v574
    %v615 = vpack.c.b16 %v579, %v575
    %v616 = vpack.c.b16 %v580, %v576
    %v617 = vpack.c.b16 %v585, %v581
    %v618 = vpack.c.b16 %v586, %v582
    %v619 = vpack.c.b16 %v587, %v583
    %v620 = vpack.c.b16 %v588, %v584
    %653 = vmatprep.subr.bf16.mxu0 %v590
    %654 = vmatpush1.bf16.msra.mxu0 %v589
    %655 = vmatprep.subr.bf16.mxu0 %v594
    %656 = vmatpush1.bf16.msra.mxu0 %v593
    %657 = vmatprep.subr.bf16.mxu0 %v598
    %658 = vmatpush1.bf16.msra.mxu0 %v597
    %659 = vmatprep.subr.bf16.mxu0 %v602
    %660 = vmatpush1.bf16.msra.mxu0 %v601
    %661 = vmatprep.subr.bf16.mxu0 %v606
    %662 = vmatpush1.bf16.msra.mxu0 %v605
    %663 = vmatprep.subr.bf16.mxu0 %v610
    %664 = vmatpush1.bf16.msra.mxu0 %v609
    %665 = vmatprep.subr.bf16.mxu0 %v614
    %666 = vmatpush1.bf16.msra.mxu0 %v613
    %667 = vmatprep.subr.bf16.mxu0 %v618
    %668 = vmatpush1.bf16.msra.mxu0 %v617
    %669 = vmatprep.subr.bf16.mxu0 0
    %670 = vmatpush1.bf16.msra.mxu0 0
    %671 = vmatprep.subr.bf16.mxu0 0
    %672 = vmatpush1.bf16.msra.mxu0 0
    %673 = vmatprep.subr.bf16.mxu0 0
    %674 = vmatpush1.bf16.msra.mxu0 0
    %675 = vmatprep.subr.bf16.mxu0 0
    %676 = vmatpush1.bf16.msra.mxu0 0
    %677 = vmatprep.subr.bf16.mxu0 0
    %678 = vmatpush1.bf16.msra.mxu0 0
    %679 = vmatprep.subr.bf16.mxu0 0
    %680 = vmatpush1.bf16.msra.mxu0 0
    %681 = vmatprep.subr.bf16.mxu0 0
    %682 = vmatpush1.bf16.msra.mxu0 0
    %683 = vmatprep.subr.bf16.mxu0 0
    %684 = vmatpush1.bf16.msra.mxu0 0
    %685 = vmatprep.mubr.bf16.mxu0 0
    %686 = vmatmul.mubr.bf16.gmra.mrb[0].mxu0 %v437
    %v687 = vpop.f32.mrb[0].mxu0
    %v688 = vadd.f32 %v476, %v687
    %v689 = vpop.f32.mrb[0].mxu0
    %v690 = vadd.f32 %v480, %v689
    %v691 = vpop.f32.mrb[0].mxu0
    %v692 = vadd.f32 %v476, %v691
    %v693 = vpop.f32.mrb[0].mxu0
    %v694 = vadd.f32 %v480, %v693
    %695 = vmatprep.mubr.bf16.mxu0 0
    %696 = vmatmul.mubr.bf16.gmra.mrb[0].mxu0 %v438
    %v697 = vpop.f32.mrb[0].mxu0
    %v698 = vadd.f32 %v476, %v697
    %v699 = vpop.f32.mrb[0].mxu0
    %v700 = vadd.f32 %v480, %v699
    %v701 = vpop.f32.mrb[0].mxu0
    %v702 = vadd.f32 %v476, %v701
    %v703 = vpop.f32.mrb[0].mxu0
    %v704 = vadd.f32 %v480, %v703
    %705 = vdwg.mxu0
    %706 = vmatprep.subr.bf16.mxu0 %v592
    %707 = vmatpush1.bf16.msra.mxu0 %v591
    %708 = vmatprep.subr.bf16.mxu0 %v596
    %709 = vmatpush1.bf16.msra.mxu0 %v595
    %710 = vmatprep.subr.bf16.mxu0 %v600
    %711 = vmatpush1.bf16.msra.mxu0 %v599
    %712 = vmatprep.subr.bf16.mxu0 %v604
    %713 = vmatpush1.bf16.msra.mxu0 %v603
    %714 = vmatprep.subr.bf16.mxu0 %v608
    %715 = vmatpush1.bf16.msra.mxu0 %v607
    %716 = vmatprep.subr.bf16.mxu0 %v612
    %717 = vmatpush1.bf16.msra.mxu0 %v611
    %718 = vmatprep.subr.bf16.mxu0 %v616
    %719 = vmatpush1.bf16.msra.mxu0 %v615
    %720 = vmatprep.subr.bf16.mxu0 %v620
    %721 = vmatpush1.bf16.msra.mxu0 %v619
    %722 = vmatprep.subr.bf16.mxu0 0
    %723 = vmatpush1.bf16.msra.mxu0 0
    %724 = vmatprep.subr.bf16.mxu0 0
    %725 = vmatpush1.bf16.msra.mxu0 0
    %726 = vmatprep.subr.bf16.mxu0 0
    %727 = vmatpush1.bf16.msra.mxu0 0
    %728 = vmatprep.subr.bf16.mxu0 0
    %729 = vmatpush1.bf16.msra.mxu0 0
    %730 = vmatprep.subr.bf16.mxu0 0
    %731 = vmatpush1.bf16.msra.mxu0 0
    %732 = vmatprep.subr.bf16.mxu0 0
    %733 = vmatpush1.bf16.msra.mxu0 0
    %734 = vmatprep.subr.bf16.mxu0 0
    %735 = vmatpush1.bf16.msra.mxu0 0
    %736 = vmatprep.subr.bf16.mxu0 0
    %737 = vmatpush1.bf16.msra.mxu0 0
    %738 = vmatprep.mubr.bf16.mxu0 0
    %739 = vmatmul.mubr.bf16.gmra.mrb[0].mxu0 %v437
    %v740 = vpop.f32.mrb[0].mxu0
    %v741 = vadd.f32 %v484, %v740
    %v742 = vpop.f32.mrb[0].mxu0
    %v743 = vadd.f32 %v488, %v742
    %v744 = vpop.f32.mrb[0].mxu0
    %v745 = vadd.f32 %v484, %v744
    %v746 = vpop.f32.mrb[0].mxu0
    %v747 = vadd.f32 %v488, %v746
    %748 = vmatprep.mubr.bf16.mxu0 0
    %749 = vmatmul.mubr.bf16.gmra.mrb[0].mxu0 %v438
    %v750 = vpop.f32.mrb[0].mxu0
    %v751 = vadd.f32 %v484, %v750
    %v752 = vpop.f32.mrb[0].mxu0
    %v753 = vadd.f32 %v488, %v752
    %v754 = vpop.f32.mrb[0].mxu0
    %v755 = vadd.f32 %v484, %v754
    %v756 = vpop.f32.mrb[0].mxu0
    %v757 = vadd.f32 %v488, %v756
    %758 = vdwg.mxu0
    %vm759 = vcmp.gt.f32.partialorder %v688, -1.5163475
    %vm760 = vcmp.gt.f32.partialorder %v690, -1.5163475
    %vm761 = vcmp.gt.f32.partialorder %v741, -1.5163475
    %vm762 = vcmp.gt.f32.partialorder %v743, -1.5163475
    %vm763 = vcmp.gt.f32.partialorder %v692, -1.5163475
    %vm764 = vcmp.gt.f32.partialorder %v694, -1.5163475
    %vm765 = vcmp.gt.f32.partialorder %v745, -1.5163475
    %vm766 = vcmp.gt.f32.partialorder %v747, -1.5163475
    %vm767 = vcmp.gt.f32.partialorder %v698, -1.5163475
    %vm768 = vcmp.gt.f32.partialorder %v700, -1.5163475
    %vm769 = vcmp.gt.f32.partialorder %v751, -1.5163475
    %vm770 = vcmp.gt.f32.partialorder %v753, -1.5163475
    %vm771 = vcmp.gt.f32.partialorder %v702, -1.5163475
    %vm772 = vcmp.gt.f32.partialorder %v704, -1.5163475
    %vm773 = vcmp.gt.f32.partialorder %v755, -1.5163475
    %vm774 = vcmp.gt.f32.partialorder %v757, -1.5163475
    %v775 = vsel %vm759, 1, 0
    %v776 = vsel %vm760, 1, 0
    %v777 = vsel %vm761, 1, 0
    %v778 = vsel %vm762, 1, 0
    %v779 = vsel %vm763, 1, 0
    %v780 = vsel %vm764, 1, 0
    %v781 = vsel %vm765, 1, 0
    %v782 = vsel %vm766, 1, 0
    %v783 = vsel %vm767, 1, 0
    %v784 = vsel %vm768, 1, 0
    %v785 = vsel %vm769, 1, 0
    %v786 = vsel %vm770, 1, 0
    %v787 = vsel %vm771, 1, 0
    %v788 = vsel %vm772, 1, 0
    %v789 = vsel %vm773, 1, 0
    %v790 = vsel %vm774, 1, 0
    %v791 = vcvt.s32.f32 %v775
    %v792 = vcvt.s32.f32 %v776
    %v793 = vcvt.s32.f32 %v777
    %v794 = vcvt.s32.f32 %v778
    %v795 = vcvt.s32.f32 %v779
    %v796 = vcvt.s32.f32 %v780
    %v797 = vcvt.s32.f32 %v781
    %v798 = vcvt.s32.f32 %v782
    %v799 = vcvt.s32.f32 %v783
    %v800 = vcvt.s32.f32 %v784
    %v801 = vcvt.s32.f32 %v785
    %v802 = vcvt.s32.f32 %v786
    %v803 = vcvt.s32.f32 %v787
    %v804 = vcvt.s32.f32 %v788
    %v805 = vcvt.s32.f32 %v789
    %v806 = vcvt.s32.f32 %v790
    %v807 = vpack.c.bf16 %v795, %v791
    %v808 = vpack.c.bf16 %v796, %v792
    %v809 = vpack.c.bf16 %v797, %v793
    %v810 = vpack.c.bf16 %v798, %v794
    %v811 = vpack.c.bf16 %v803, %v799
    %v812 = vpack.c.bf16 %v804, %v800
    %v813 = vpack.c.bf16 %v805, %v801
    %v814 = vpack.c.bf16 %v806, %v802
    %v823 = vunpack.c.l.b16 %v807
    %v824 = vunpack.c.l.b16 %v808
    %v825 = vunpack.c.l.b16 %v809
    %v826 = vunpack.c.l.b16 %v810
    %v827 = vunpack.c.h.b16 %v807
    %v828 = vunpack.c.h.b16 %v808
    %v829 = vunpack.c.h.b16 %v809
    %v830 = vunpack.c.h.b16 %v810
    %v831 = vunpack.c.l.b16 %v811
    %v832 = vunpack.c.l.b16 %v812
    %v833 = vunpack.c.l.b16 %v813
    %v834 = vunpack.c.l.b16 %v814
    %v835 = vunpack.c.h.b16 %v811
    %v836 = vunpack.c.h.b16 %v812
    %v837 = vunpack.c.h.b16 %v813
    %v838 = vunpack.c.h.b16 %v814
    %v839 = vpack.c.b16 %v824, %v823
    %v840 = vpack.c.b16 %v826, %v825
    %v841 = vpack.c.b16 %v828, %v827
    %v842 = vpack.c.b16 %v830, %v829
    %v843 = vpack.c.b16 %v832, %v831
    %v844 = vpack.c.b16 %v834, %v833
    %v845 = vpack.c.b16 %v836, %v835
    %v846 = vpack.c.b16 %v838, %v837
    %855 = vst [vmem:[%s5] sm:$0xff] %v839
    %856 = vst [vmem:[%s5 + $0x8] sm:$0xff] %v840
    %857 = vst [vmem:[%s5 + $0x10] sm:$0xff] %v841
    %858 = vst [vmem:[%s5 + $0x18] sm:$0xff] %v842
    %859 = vst [vmem:[%s5 + $0x20] sm:$0xff] %v843
    %860 = vst [vmem:[%s5 + $0x28] sm:$0xff] %v844
    %861 = vst [vmem:[%s5 + $0x30] sm:$0xff] %v845
    %862 = vst [vmem:[%s5 + $0x38] sm:$0xff] %v846
    // Predicated region
    $region22: #{simple_autoencoder_forward.1} parent=1 // pred_check
      _
    $region23: #{simple_autoencoder_forward.1} parent=1 // pred_check_branch
      %864 = sbr.rel (0) target = $region25
    $region24: #{simple_autoencoder_forward.1} parent=1 // pred_region
      _
    $region25: #{simple_autoencoder_forward.1} parent=1 // pred_fallthru
      _
    // Predicated region
    $region26: #{simple_autoencoder_forward.1} parent=1 // pred_check
      _
    $region27: #{simple_autoencoder_forward.1} parent=1 // pred_check_branch
      %866 = sbr.rel (0) target = $region29
    $region28: #{simple_autoencoder_forward.1} parent=1 // pred_region
      %s868 = ssub.s32 512, 512
      %869 = vsyncadd [#allocation3], %s868
      %s870 = sshll.u32 [#allocation2], 4
      %s871 = int_to_ptr.vmem [resolvable:$true] %s870
      %876 = dma.vmem_to_hbm [thread:$0]  %s871, 512, %s6, [#allocation3], 128, 128, 8
    $region29: #{simple_autoencoder_forward.1} parent=1 // pred_fallthru
      _
    // Predicated region
    $region30: #{simple_autoencoder_forward.1} parent=1 // pred_check
      _
    $region31: #{simple_autoencoder_forward.1} parent=1 // pred_check_branch
      %878 = sbr.rel (0) target = $region33
    $region32: #{simple_autoencoder_forward.1} parent=1 // pred_region
      _
    $region33: #{simple_autoencoder_forward.1} parent=1 // pred_fallthru
      _
    // Predicated region
    $region34: #{simple_autoencoder_forward.1} parent=1 // pred_check
      _
    $region35: #{simple_autoencoder_forward.1} parent=1 // pred_check_branch
      %880 = sbr.rel (0) target = $region37
    $region36: #{simple_autoencoder_forward.1} parent=1 // pred_region
      %881 = dma.done [#allocation3], 512
    $region37: #{simple_autoencoder_forward.1} parent=1 // pred_fallthru
      _
    %882 = vsyncpa [#allocation3], 1

</llo_original>
